<compile_context>
chip_gen: v7x
topology: tpu7x:2x2x1
jax: 0.10.0
libtpu: 0.0.40
codegen_flags: <defaults>
</compile_context>

<pallas_src>
import jax
import jax.numpy as jnp
from jax.experimental import pallas as pl
from jax.experimental.pallas import tpu as pltpu

_SUBLANE = 8
_TB_CAP = 4096  # batch-tile cap; sweep 2048-8192 if desired.


def _round_up(n, m):
    return ((n + m - 1) // m) * m


def trpo_actor_kernel(x_ref, w1_ref, b1_ref, w2_ref, b2_ref, w3_ref, b3_ref,
                      mu_ref):
    x = x_ref[...]
    h1 = jnp.tanh(
        jnp.dot(x, w1_ref[...], preferred_element_type=jnp.float32) + b1_ref[...])
    h2 = jnp.tanh(
        jnp.dot(h1, w2_ref[...], preferred_element_type=jnp.float32) + b2_ref[...])
    mu = jnp.dot(h2, w3_ref[...], preferred_element_type=jnp.float32) + b3_ref[...]
    mu_ref[...] = mu.astype(mu_ref.dtype)


@jax.jit
def trpo_actor_forward(x, w1, b1, w2, b2, w3, b3):
    B, num_inputs = x.shape
    num_outputs = w3.shape[1]

    # Batch tile: multiple of 8 sublanes, at least 2 grid steps when B allows
    # it (v7x 2-TC sharding), capped so double-buffered tiles stay small.
    tb = min(_TB_CAP, _round_up(max(pl.cdiv(B, 2), 1), _SUBLANE))
    grid = (pl.cdiv(B, tb),)

    # Tiny weights/biases: whole array as one block, constant index_map — the
    # pipeline DMAs them once (block index never changes across grid steps).
    const2d = lambda shape: pl.BlockSpec(shape, lambda i: (0, 0))

    mu = pl.pallas_call(
        trpo_actor_kernel,
        out_shape=jax.ShapeDtypeStruct((B, num_outputs), x.dtype),
        grid=grid,
        in_specs=[
            pl.BlockSpec((tb, num_inputs), lambda i: (i, 0)),
            const2d(w1.shape), const2d(b1.shape),
            const2d(w2.shape), const2d(b2.shape),
            const2d(w3.shape), const2d(b3.shape),
        ],
        out_specs=pl.BlockSpec((tb, num_outputs), lambda i: (i, 0)),
        compiler_params=pltpu.CompilerParams(
            dimension_semantics=("parallel",),
            vmem_limit_bytes=32 * 1024 * 1024,
        ),
    )(x, w1, b1, w2, b2, w3, b3)

    # logstd = zeros_like(mu); std = exp(0) = 1 — compile-time constant, no
    # reason to burn an HBM store path in the kernel on it.
    std = jnp.ones((B, num_outputs), mu.dtype)
    return mu, std


def init_params(key, num_inputs, num_outputs, hidden=32):
    """Deterministic init mimicking nn.Linear default (uniform(+-1/sqrt(fan_in))),
    plus the module's fc3.weight *= 0.1 and fc3.bias *= 0.0."""
    k1, k2, k3, k4, k5, k6 = jax.random.split(key, 6)

    def lin_init(kw, kb, fan_in, fan_out):
        bound = 1.0 / jnp.sqrt(fan_in)
        # stored as [in, out] (already transposed vs. PyTorch's [out, in])
        w = jax.random.uniform(kw, (fan_in, fan_out), jnp.float32, -bound, bound)
        b = jax.random.uniform(kb, (1, fan_out), jnp.float32, -bound, bound)
        return w, b

    w1, b1 = lin_init(k1, k2, num_inputs, hidden)
    w2, b2 = lin_init(k3, k4, hidden, hidden)
    w3, b3 = lin_init(k5, k6, hidden, num_outputs)
    w3 = w3 * 0.1
    b3 = b3 * 0.0
    return w1, b1, w2, b2, w3, b3


def _reference(x, params):
    w1, b1, w2, b2, w3, b3 = params
    h1 = jnp.tanh(x @ w1 + b1)
    h2 = jnp.tanh(h1 @ w2 + b2)
    mu = h2 @ w3 + b3
    std = jnp.exp(jnp.zeros_like(mu))
    return mu, std


if __name__ == "__main__":
    num_inputs, num_outputs = 16, 4

    key = jax.random.PRNGKey(0)
    kx, kx2, kp = jax.random.split(key, 3)
    params = init_params(kp, num_inputs, num_outputs)

    # Small, sublane-aligned batch (single grid step).
    x = jax.random.normal(kx, (8, num_inputs), dtype=jnp.float32)
    mu, std = trpo_actor_forward(x, *params)
    jax.block_until_ready((mu, std))
    mu_ref, std_ref = _reference(x, params)
    assert mu.shape == (8, num_outputs) and std.shape == (8, num_outputs)
    assert jnp.allclose(mu, mu_ref, atol=1e-5), "mu mismatch (B=8)"
    assert jnp.allclose(std, std_ref, atol=1e-6), "std mismatch (B=8)"

    # Non-aligned batch exercises the cdiv grid with a partial last block.
    x2 = jax.random.normal(kx2, (10, num_inputs), dtype=jnp.float32)
    mu2, std2 = trpo_actor_forward(x2, *params)
    jax.block_until_ready((mu2, std2))
    mu2_ref, std2_ref = _reference(x2, params)
    assert mu2.shape == (10, num_outputs) and std2.shape == (10, num_outputs)
    assert jnp.allclose(mu2, mu2_ref, atol=1e-5), "mu mismatch (B=10)"
    assert jnp.allclose(std2, std2_ref, atol=1e-6), "std mismatch (B=10)"

    print("KERNEL_OK")
</pallas_src>

<mosaic_0001>
module attributes {stable_mosaic.version = 11 : i64} {
  func.func @trpo_actor_kernel(%arg0: i32, %arg1: memref<8x16xf32, #tpu.memory_space<vmem>>, %arg2: memref<16x32xf32, #tpu.memory_space<vmem>>, %arg3: memref<1x32xf32, #tpu.memory_space<vmem>>, %arg4: memref<32x32xf32, #tpu.memory_space<vmem>>, %arg5: memref<1x32xf32, #tpu.memory_space<vmem>>, %arg6: memref<32x4xf32, #tpu.memory_space<vmem>>, %arg7: memref<1x4xf32, #tpu.memory_space<vmem>>, %arg8: memref<8x4xf32, #tpu.memory_space<vmem>>) attributes {dimension_semantics = [#tpu.dimension_semantics<parallel>], iteration_bounds = array<i64: 1>, scalar_prefetch = 0 : i64, scratch_operands = 0 : i64, tpu.core_type = #tpu.core_type<tc>, window_params = [{transform_indices = @transform_0, window_bounds = array<i64: 8, 16>}, {pipeline_mode = #tpu.pipeline_mode<synchronous>, transform_indices = @transform_1, window_bounds = array<i64: 16, 32>}, {pipeline_mode = #tpu.pipeline_mode<synchronous>, transform_indices = @transform_2, window_bounds = array<i64: 1, 32>}, {pipeline_mode = #tpu.pipeline_mode<synchronous>, transform_indices = @transform_3, window_bounds = array<i64: 32, 32>}, {pipeline_mode = #tpu.pipeline_mode<synchronous>, transform_indices = @transform_4, window_bounds = array<i64: 1, 32>}, {pipeline_mode = #tpu.pipeline_mode<synchronous>, transform_indices = @transform_5, window_bounds = array<i64: 32, 4>}, {pipeline_mode = #tpu.pipeline_mode<synchronous>, transform_indices = @transform_6, window_bounds = array<i64: 1, 4>}, {transform_indices = @transform_7, window_bounds = array<i64: 8, 4>}]} {
    %c0 = arith.constant 0 : index
    %c0_0 = arith.constant 0 : index
    %0 = vector.load %arg1[%c0, %c0_0] : memref<8x16xf32, #tpu.memory_space<vmem>>, vector<8x16xf32>
    %c0_1 = arith.constant 0 : index
    %c0_2 = arith.constant 0 : index
    %1 = vector.load %arg2[%c0_1, %c0_2] : memref<16x32xf32, #tpu.memory_space<vmem>>, vector<16x32xf32>
    %cst = arith.constant dense<0.000000e+00> : vector<8x32xf32>
    %2 = tpu.matmul %0, %1, %cst {dimension_numbers = #tpu.dot_dimension_numbers<[1], [0], [0], [1], [0, 0, 1, 1], [], []>} : vector<8x16xf32>, vector<16x32xf32>, vector<8x32xf32> -> vector<8x32xf32>
    %c0_3 = arith.constant 0 : index
    %c0_4 = arith.constant 0 : index
    %3 = vector.load %arg3[%c0_3, %c0_4] : memref<1x32xf32, #tpu.memory_space<vmem>>, vector<1x32xf32>
    %4 = vector.broadcast %3 : vector<1x32xf32> to vector<8x32xf32>
    %5 = arith.addf %2, %4 : vector<8x32xf32>
    %6 = math.tanh %5 : vector<8x32xf32>
    %c0_5 = arith.constant 0 : index
    %c0_6 = arith.constant 0 : index
    %7 = vector.load %arg4[%c0_5, %c0_6] : memref<32x32xf32, #tpu.memory_space<vmem>>, vector<32x32xf32>
    %cst_7 = arith.constant dense<0.000000e+00> : vector<8x32xf32>
    %8 = tpu.matmul %6, %7, %cst_7 {dimension_numbers = #tpu.dot_dimension_numbers<[1], [0], [0], [1], [0, 0, 1, 1], [], []>} : vector<8x32xf32>, vector<32x32xf32>, vector<8x32xf32> -> vector<8x32xf32>
    %c0_8 = arith.constant 0 : index
    %c0_9 = arith.constant 0 : index
    %9 = vector.load %arg5[%c0_8, %c0_9] : memref<1x32xf32, #tpu.memory_space<vmem>>, vector<1x32xf32>
    %10 = vector.broadcast %9 : vector<1x32xf32> to vector<8x32xf32>
    %11 = arith.addf %8, %10 : vector<8x32xf32>
    %12 = math.tanh %11 : vector<8x32xf32>
    %c0_10 = arith.constant 0 : index
    %c0_11 = arith.constant 0 : index
    %13 = vector.load %arg6[%c0_10, %c0_11] : memref<32x4xf32, #tpu.memory_space<vmem>>, vector<32x4xf32>
    %cst_12 = arith.constant dense<0.000000e+00> : vector<8x4xf32>
    %14 = tpu.matmul %12, %13, %cst_12 {dimension_numbers = #tpu.dot_dimension_numbers<[1], [0], [0], [1], [0, 0, 1, 1], [], []>} : vector<8x32xf32>, vector<32x4xf32>, vector<8x4xf32> -> vector<8x4xf32>
    %c0_13 = arith.constant 0 : index
    %c0_14 = arith.constant 0 : index
    %15 = vector.load %arg7[%c0_13, %c0_14] : memref<1x4xf32, #tpu.memory_space<vmem>>, vector<1x4xf32>
    %16 = vector.broadcast %15 : vector<1x4xf32> to vector<8x4xf32>
    %17 = arith.addf %14, %16 : vector<8x4xf32>
    %c0_15 = arith.constant 0 : index
    %c0_16 = arith.constant 0 : index
    %18 = vector.load %arg8[%c0_15, %c0_16] : memref<8x4xf32, #tpu.memory_space<vmem>>, vector<8x4xf32>
    tpu.vector_store %arg8[%c0_15, %c0_16], %17 {strides = array<i32>} : memref<8x4xf32, #tpu.memory_space<vmem>>, vector<8x4xf32>,
    return
  }
  func.func @transform_0(%arg0: i32) -> (i32, i32) {
    %c0_i32 = arith.constant 0 : i32
    %c0_i32_0 = arith.constant 0 : i32
    return %arg0, %c0_i32 : i32, i32
  }
  func.func @transform_1(%arg0: i32) -> (i32, i32) {
    %c0_i32 = arith.constant 0 : i32
    %c0_i32_0 = arith.constant 0 : i32
    %c0_i32_1 = arith.constant 0 : i32
    return %c0_i32, %c0_i32_0 : i32, i32
  }
  func.func @transform_2(%arg0: i32) -> (i32, i32) {
    %c0_i32 = arith.constant 0 : i32
    %c0_i32_0 = arith.constant 0 : i32
    %c0_i32_1 = arith.constant 0 : i32
    return %c0_i32, %c0_i32_0 : i32, i32
  }
  func.func @transform_3(%arg0: i32) -> (i32, i32) {
    %c0_i32 = arith.constant 0 : i32
    %c0_i32_0 = arith.constant 0 : i32
    %c0_i32_1 = arith.constant 0 : i32
    return %c0_i32, %c0_i32_0 : i32, i32
  }
  func.func @transform_4(%arg0: i32) -> (i32, i32) {
    %c0_i32 = arith.constant 0 : i32
    %c0_i32_0 = arith.constant 0 : i32
    %c0_i32_1 = arith.constant 0 : i32
    return %c0_i32, %c0_i32_0 : i32, i32
  }
  func.func @transform_5(%arg0: i32) -> (i32, i32) {
    %c0_i32 = arith.constant 0 : i32
    %c0_i32_0 = arith.constant 0 : i32
    %c0_i32_1 = arith.constant 0 : i32
    return %c0_i32, %c0_i32_0 : i32, i32
  }
  func.func @transform_6(%arg0: i32) -> (i32, i32) {
    %c0_i32 = arith.constant 0 : i32
    %c0_i32_0 = arith.constant 0 : i32
    %c0_i32_1 = arith.constant 0 : i32
    return %c0_i32, %c0_i32_0 : i32, i32
  }
  func.func @transform_7(%arg0: i32) -> (i32, i32) {
    %c0_i32 = arith.constant 0 : i32
    %c0_i32_0 = arith.constant 0 : i32
    return %arg0, %c0_i32 : i32, i32
  }
}

</mosaic_0001>

<llo_original>
// kernel: trpo_actor_forward.1
$region0: #{trpo_actor_forward.1}
  #allocation0 [shape = 'u32[]', space=smem, size = 0x4, offset = 0x4, fixed_abs, tag = 'smem constant byte address 0x4 - core index']
  #allocation1 [shape = 'u32[144,128]{1,0:T(1,128)}', space=vmem, size = 0x12000, scoped, tag = 'internal scratch']
  %s0 = inlined_call_operand.hbm [shape: f32[8,16], index: 0, kind: input, shape index: {}]
  %s1 = inlined_call_operand.hbm [shape: f32[16,32], index: 1, kind: input, shape index: {}]
  %s2 = inlined_call_operand.vmem [shape: f32[1,32], index: 2, kind: input, shape index: {}]
  %s3 = inlined_call_operand.vmem [shape: f32[32,32], index: 3, kind: input, shape index: {}]
  %s4 = inlined_call_operand.vmem [shape: f32[1,32], index: 4, kind: input, shape index: {}]
  %s5 = inlined_call_operand.vmem [shape: f32[32,4], index: 5, kind: input, shape index: {}]
  %s6 = inlined_call_operand.vmem [shape: f32[1,4], index: 6, kind: input, shape index: {}]
  %s7 = inlined_call_operand.vmem [shape: f32[8,4], index: 7, kind: output, shape index: {}]
  %s8 = sld [smem:[#allocation0]]
  $region46: #{trpo_actor_forward.1} parent=0
    _
  %s10 = ssub.s32 1, %s8
  %s11 = scalar_select 0, %s10, %s8
  $region1: #{trpo_actor_forward.1} parent=0
    #allocation2 [shape = 'u8[4096]{0}', space=vmem, size = 0x1000, scoped, tag = 'input window, operand 0, single buffered']
    #allocation3 [shape = 's32[1]{0}', space=sflag, size = 0x4, scoped, tag = 'scoped memory for trpo_actor_forward.1']
    #allocation4 [shape = 'u8[8192]{0}', space=vmem, size = 0x2000, scoped, tag = 'input window, operand 1, single buffered']
    #allocation5 [shape = 's32[1]{0}', space=sflag, size = 0x4, scoped, tag = 'scoped memory for trpo_actor_forward.1']
    %12 = vsyncpa [#allocation3], 0
    %13 = vsyncpa [#allocation5], 0
    // Predicated region
    $region2: #{trpo_actor_forward.1} parent=1 // pred_check
      _
    $region3: #{trpo_actor_forward.1} parent=1 // pred_check_branch
      %15 = sbr.rel (0) target = $region5
    $region4: #{trpo_actor_forward.1} parent=1 // pred_region
      %s17 = ssub.s32 128, 128
      %18 = vsyncadd [#allocation3], %s17
      %s20 = sshll.u32 [#allocation2], 4
      %s21 = int_to_ptr.vmem [resolvable:$true] %s20
      %23 = dma.hbm_to_vmem [thread:$0]  %s0, 128, %s21, [#allocation3]
    $region5: #{trpo_actor_forward.1} parent=1 // pred_fallthru
      _
    // Predicated region
    $region6: #{trpo_actor_forward.1} parent=1 // pred_check
      _
    $region7: #{trpo_actor_forward.1} parent=1 // pred_check_branch
      %25 = sbr.rel (0) target = $region9
    $region8: #{trpo_actor_forward.1} parent=1 // pred_region
      %s27 = ssub.s32 256, 256
      %28 = vsyncadd [#allocation5], %s27
      %s29 = sshll.u32 [#allocation4], 4
      %s30 = int_to_ptr.vmem [resolvable:$true] %s29
      %35 = dma.hbm_to_vmem [thread:$0]  %s1, 256, %s30, [#allocation5], 128, 128, 8
    $region9: #{trpo_actor_forward.1} parent=1 // pred_fallthru
      _
    // Predicated region
    $region10: #{trpo_actor_forward.1} parent=1 // pred_check
      _
    $region11: #{trpo_actor_forward.1} parent=1 // pred_check_branch
      %37 = sbr.rel (0) target = $region13
    $region12: #{trpo_actor_forward.1} parent=1 // pred_region
      _
    $region13: #{trpo_actor_forward.1} parent=1 // pred_fallthru
      _
    // Predicated region
    $region14: #{trpo_actor_forward.1} parent=1 // pred_check
      _
    $region15: #{trpo_actor_forward.1} parent=1 // pred_check_branch
      %39 = sbr.rel (0) target = $region17
    $region16: #{trpo_actor_forward.1} parent=1 // pred_region
      _
    $region17: #{trpo_actor_forward.1} parent=1 // pred_fallthru
      _
    // Predicated region
    $region18: #{trpo_actor_forward.1} parent=1 // pred_check
      _
    $region19: #{trpo_actor_forward.1} parent=1 // pred_check_branch
      %41 = sbr.rel (0) target = $region21
    $region20: #{trpo_actor_forward.1} parent=1 // pred_region
      _
    $region21: #{trpo_actor_forward.1} parent=1 // pred_fallthru
      _
    // Predicated region
    $region22: #{trpo_actor_forward.1} parent=1 // pred_check
      _
    $region23: #{trpo_actor_forward.1} parent=1 // pred_check_branch
      %43 = sbr.rel (0) target = $region25
    $region24: #{trpo_actor_forward.1} parent=1 // pred_region
      _
    $region25: #{trpo_actor_forward.1} parent=1 // pred_fallthru
      _
    // Predicated region
    $region26: #{trpo_actor_forward.1} parent=1 // pred_check
      _
    $region27: #{trpo_actor_forward.1} parent=1 // pred_check_branch
      %45 = sbr.rel (0) target = $region29
    $region28: #{trpo_actor_forward.1} parent=1 // pred_region
      _
    $region29: #{trpo_actor_forward.1} parent=1 // pred_fallthru
      _
    // Predicated region
    $region30: #{trpo_actor_forward.1} parent=1 // pred_check
      _
    $region31: #{trpo_actor_forward.1} parent=1 // pred_check_branch
      %47 = sbr.rel (0) target = $region33
    $region32: #{trpo_actor_forward.1} parent=1 // pred_region
      %48 = dma.done [#allocation3], 128
    $region33: #{trpo_actor_forward.1} parent=1 // pred_fallthru
      _
    // Predicated region
    $region34: #{trpo_actor_forward.1} parent=1 // pred_check
      _
    $region35: #{trpo_actor_forward.1} parent=1 // pred_check_branch
      %50 = sbr.rel (0) target = $region37
    $region36: #{trpo_actor_forward.1} parent=1 // pred_region
      %51 = dma.done [#allocation5], 256
    $region37: #{trpo_actor_forward.1} parent=1 // pred_fallthru
      _
    %v52 = vld [vmem:[#allocation2] sm:$0xff]
    %v53 = vld [vmem:[#allocation4] sm:$0xff]
    %v54 = vld [vmem:[#allocation4 + $0x8] sm:$0xff]
    %v55 = vld [vmem:[%s2] sm:$0x1]
    %v57 = vlaneseq
    %v58 = vshrl.u32 %v57, 7
    %v59 = vsub.s32 0, %v58
    %v60 = vrot.slane %v55, %v59
    %vm62 = vcmask 130048
    %v64 = vsel %vm62, %v52, 0
    %66 = vmatprep.subr.mxu0 0.0
    %67 = vmatpush1.msra.mxu0 %v53
    %68 = vmatprep.subr.mxu0 0.0
    %69 = vmatpush1.msra.mxu0 %v54
    %70 = vmatprep.subr.mxu0 0.0
    %71 = vmatpush1.msra.mxu0 0.0
    %72 = vmatprep.subr.mxu0 0.0
    %73 = vmatpush1.msra.mxu0 0.0
    %74 = vmatprep.subr.mxu0 0.0
    %75 = vmatpush1.msra.mxu0 0.0
    %76 = vmatprep.subr.mxu0 0.0
    %77 = vmatpush1.msra.mxu0 0.0
    %78 = vmatprep.subr.mxu0 0.0
    %79 = vmatpush1.msra.mxu0 0.0
    %80 = vmatprep.subr.mxu0 0.0
    %81 = vmatpush1.msra.mxu0 0.0
    %82 = vmatprep.subr.mxu0 0.0
    %83 = vmatpush1.msra.mxu0 0.0
    %84 = vmatprep.subr.mxu0 0.0
    %85 = vmatpush1.msra.mxu0 0.0
    %86 = vmatprep.subr.mxu0 0.0
    %87 = vmatpush1.msra.mxu0 0.0
    %88 = vmatprep.subr.mxu0 0.0
    %89 = vmatpush1.msra.mxu0 0.0
    %90 = vmatprep.subr.mxu0 0.0
    %91 = vmatpush1.msra.mxu0 0.0
    %92 = vmatprep.subr.mxu0 0.0
    %93 = vmatpush1.msra.mxu0 0.0
    %94 = vmatprep.subr.mxu0 0.0
    %95 = vmatpush1.msra.mxu0 0.0
    %96 = vmatprep.subr.mxu0 0.0
    %97 = vmatpush1.msra.mxu0 0.0
    %98 = vmatprep.subr.mxu0 0.0
    %99 = vmatpush1.msra.mxu0 0.0
    %100 = vmatprep.subr.mxu0 0.0
    %101 = vmatpush1.msra.mxu0 0.0
    %102 = vmatprep.subr.mxu0 0.0
    %103 = vmatpush1.msra.mxu0 0.0
    %104 = vmatprep.subr.mxu0 0.0
    %105 = vmatpush1.msra.mxu0 0.0
    %106 = vmatprep.subr.mxu0 0.0
    %107 = vmatpush1.msra.mxu0 0.0
    %108 = vmatprep.subr.mxu0 0.0
    %109 = vmatpush1.msra.mxu0 0.0
    %110 = vmatprep.subr.mxu0 0.0
    %111 = vmatpush1.msra.mxu0 0.0
    %112 = vmatprep.subr.mxu0 0.0
    %113 = vmatpush1.msra.mxu0 0.0
    %114 = vmatprep.subr.mxu0 0.0
    %115 = vmatpush1.msra.mxu0 0.0
    %116 = vmatprep.subr.mxu0 0.0
    %117 = vmatpush1.msra.mxu0 0.0
    %118 = vmatprep.subr.mxu0 0.0
    %119 = vmatpush1.msra.mxu0 0.0
    %120 = vmatprep.subr.mxu0 0.0
    %121 = vmatpush1.msra.mxu0 0.0
    %122 = vmatprep.subr.mxu0 0.0
    %123 = vmatpush1.msra.mxu0 0.0
    %124 = vmatprep.subr.mxu0 0.0
    %125 = vmatpush1.msra.mxu0 0.0
    %126 = vmatprep.subr.mxu0 0.0
    %127 = vmatpush1.msra.mxu0 0.0
    %128 = vmatprep.subr.mxu0 0.0
    %129 = vmatpush1.msra.mxu0 0.0
    %130 = vmatprep.mubr.f32.mxu0 0.0
    %131 = vmatmul.mubr.f32.gmra.mrb[0].mxu0 %v64
    %v132 = vpop.f32.mrb[0].mxu0
    %v133 = vadd.f32 %v60, %v132
    %v134 = vpop.f32.mrb[0].mxu0
    %135 = vdwg.mxu0
    %v136 = vtanh.pop %v133
    %v137 = vld [vmem:[%s3] sm:$0xff]
    %v138 = vld [vmem:[%s3 + $0x8] sm:$0xff]
    %v139 = vld [vmem:[%s3 + $0x10] sm:$0xff]
    %v140 = vld [vmem:[%s3 + $0x18] sm:$0xff]
    %v141 = vld [vmem:[%s4] sm:$0x1]
    %v143 = vlaneseq
    %v144 = vshrl.u32 %v143, 7
    %v145 = vsub.s32 0, %v144
    %v146 = vrot.slane %v141, %v145
    %vm148 = vcmask 261120
    %v150 = vsel %vm148, %v136, 0
    %152 = vmatprep.subr.mxu0 0.0
    %153 = vmatpush1.msra.mxu0 %v137
    %154 = vmatprep.subr.mxu0 0.0
    %155 = vmatpush1.msra.mxu0 %v138
    %156 = vmatprep.subr.mxu0 0.0
    %157 = vmatpush1.msra.mxu0 %v139
    %158 = vmatprep.subr.mxu0 0.0
    %159 = vmatpush1.msra.mxu0 %v140
    %160 = vmatprep.subr.mxu0 0.0
    %161 = vmatpush1.msra.mxu0 0.0
    %162 = vmatprep.subr.mxu0 0.0
    %163 = vmatpush1.msra.mxu0 0.0
    %164 = vmatprep.subr.mxu0 0.0
    %165 = vmatpush1.msra.mxu0 0.0
    %166 = vmatprep.subr.mxu0 0.0
    %167 = vmatpush1.msra.mxu0 0.0
    %168 = vmatprep.subr.mxu0 0.0
    %169 = vmatpush1.msra.mxu0 0.0
    %170 = vmatprep.subr.mxu0 0.0
    %171 = vmatpush1.msra.mxu0 0.0
    %172 = vmatprep.subr.mxu0 0.0
    %173 = vmatpush1.msra.mxu0 0.0
    %174 = vmatprep.subr.mxu0 0.0
    %175 = vmatpush1.msra.mxu0 0.0
    %176 = vmatprep.subr.mxu0 0.0
    %177 = vmatpush1.msra.mxu0 0.0
    %178 = vmatprep.subr.mxu0 0.0
    %179 = vmatpush1.msra.mxu0 0.0
    %180 = vmatprep.subr.mxu0 0.0
    %181 = vmatpush1.msra.mxu0 0.0
    %182 = vmatprep.subr.mxu0 0.0
    %183 = vmatpush1.msra.mxu0 0.0
    %184 = vmatprep.subr.mxu0 0.0
    %185 = vmatpush1.msra.mxu0 0.0
    %186 = vmatprep.subr.mxu0 0.0
    %187 = vmatpush1.msra.mxu0 0.0
    %188 = vmatprep.subr.mxu0 0.0
    %189 = vmatpush1.msra.mxu0 0.0
    %190 = vmatprep.subr.mxu0 0.0
    %191 = vmatpush1.msra.mxu0 0.0
    %192 = vmatprep.subr.mxu0 0.0
    %193 = vmatpush1.msra.mxu0 0.0
    %194 = vmatprep.subr.mxu0 0.0
    %195 = vmatpush1.msra.mxu0 0.0
    %196 = vmatprep.subr.mxu0 0.0
    %197 = vmatpush1.msra.mxu0 0.0
    %198 = vmatprep.subr.mxu0 0.0
    %199 = vmatpush1.msra.mxu0 0.0
    %200 = vmatprep.subr.mxu0 0.0
    %201 = vmatpush1.msra.mxu0 0.0
    %202 = vmatprep.subr.mxu0 0.0
    %203 = vmatpush1.msra.mxu0 0.0
    %204 = vmatprep.subr.mxu0 0.0
    %205 = vmatpush1.msra.mxu0 0.0
    %206 = vmatprep.subr.mxu0 0.0
    %207 = vmatpush1.msra.mxu0 0.0
    %208 = vmatprep.subr.mxu0 0.0
    %209 = vmatpush1.msra.mxu0 0.0
    %210 = vmatprep.subr.mxu0 0.0
    %211 = vmatpush1.msra.mxu0 0.0
    %212 = vmatprep.subr.mxu0 0.0
    %213 = vmatpush1.msra.mxu0 0.0
    %214 = vmatprep.subr.mxu0 0.0
    %215 = vmatpush1.msra.mxu0 0.0
    %216 = vmatprep.mubr.f32.mxu0 0.0
    %217 = vmatmul.mubr.f32.gmra.mrb[0].mxu0 %v150
    %v218 = vpop.f32.mrb[0].mxu0
    %v219 = vadd.f32 %v146, %v218
    %v220 = vpop.f32.mrb[0].mxu0
    %221 = vdwg.mxu0
    %v222 = vtanh.pop %v219
    %v223 = vld [vmem:[%s5] sm:$0xff]
    %v224 = vld [vmem:[%s5 + $0x8] sm:$0xff]
    %v225 = vld [vmem:[%s5 + $0x10] sm:$0xff]
    %v226 = vld [vmem:[%s5 + $0x18] sm:$0xff]
    %v227 = vld [vmem:[%s6] sm:$0x1]
    %v229 = vlaneseq
    %v230 = vshrl.u32 %v229, 7
    %v231 = vsub.s32 0, %v230
    %v232 = vrot.slane %v227, %v231
    %v235 = vsel %vm148, %v222, 0
    %237 = vmatprep.subr.mxu0 0.0
    %238 = vmatpush1.msra.mxu0 %v223
    %239 = vmatprep.subr.mxu0 0.0
    %240 = vmatpush1.msra.mxu0 %v224
    %241 = vmatprep.subr.mxu0 0.0
    %242 = vmatpush1.msra.mxu0 %v225
    %243 = vmatprep.subr.mxu0 0.0
    %244 = vmatpush1.msra.mxu0 %v226
    %245 = vmatprep.subr.mxu0 0.0
    %246 = vmatpush1.msra.mxu0 0.0
    %247 = vmatprep.subr.mxu0 0.0
    %248 = vmatpush1.msra.mxu0 0.0
    %249 = vmatprep.subr.mxu0 0.0
    %250 = vmatpush1.msra.mxu0 0.0
    %251 = vmatprep.subr.mxu0 0.0
    %252 = vmatpush1.msra.mxu0 0.0
    %253 = vmatprep.subr.mxu0 0.0
    %254 = vmatpush1.msra.mxu0 0.0
    %255 = vmatprep.subr.mxu0 0.0
    %256 = vmatpush1.msra.mxu0 0.0
    %257 = vmatprep.subr.mxu0 0.0
    %258 = vmatpush1.msra.mxu0 0.0
    %259 = vmatprep.subr.mxu0 0.0
    %260 = vmatpush1.msra.mxu0 0.0
    %261 = vmatprep.subr.mxu0 0.0
    %262 = vmatpush1.msra.mxu0 0.0
    %263 = vmatprep.subr.mxu0 0.0
    %264 = vmatpush1.msra.mxu0 0.0
    %265 = vmatprep.subr.mxu0 0.0
    %266 = vmatpush1.msra.mxu0 0.0
    %267 = vmatprep.subr.mxu0 0.0
    %268 = vmatpush1.msra.mxu0 0.0
    %269 = vmatprep.subr.mxu0 0.0
    %270 = vmatpush1.msra.mxu0 0.0
    %271 = vmatprep.subr.mxu0 0.0
    %272 = vmatpush1.msra.mxu0 0.0
    %273 = vmatprep.subr.mxu0 0.0
    %274 = vmatpush1.msra.mxu0 0.0
    %275 = vmatprep.subr.mxu0 0.0
    %276 = vmatpush1.msra.mxu0 0.0
    %277 = vmatprep.subr.mxu0 0.0
    %278 = vmatpush1.msra.mxu0 0.0
    %279 = vmatprep.subr.mxu0 0.0
    %280 = vmatpush1.msra.mxu0 0.0
    %281 = vmatprep.subr.mxu0 0.0
    %282 = vmatpush1.msra.mxu0 0.0
    %283 = vmatprep.subr.mxu0 0.0
    %284 = vmatpush1.msra.mxu0 0.0
    %285 = vmatprep.subr.mxu0 0.0
    %286 = vmatpush1.msra.mxu0 0.0
    %287 = vmatprep.subr.mxu0 0.0
    %288 = vmatpush1.msra.mxu0 0.0
    %289 = vmatprep.subr.mxu0 0.0
    %290 = vmatpush1.msra.mxu0 0.0
    %291 = vmatprep.subr.mxu0 0.0
    %292 = vmatpush1.msra.mxu0 0.0
    %293 = vmatprep.subr.mxu0 0.0
    %294 = vmatpush1.msra.mxu0 0.0
    %295 = vmatprep.subr.mxu0 0.0
    %296 = vmatpush1.msra.mxu0 0.0
    %297 = vmatprep.subr.mxu0 0.0
    %298 = vmatpush1.msra.mxu0 0.0
    %299 = vmatprep.subr.mxu0 0.0
    %300 = vmatpush1.msra.mxu0 0.0
    %301 = vmatprep.mubr.f32.mxu0 0.0
    %302 = vmatmul.mubr.f32.gmra.mrb[0].mxu0 %v235
    %v303 = vpop.f32.mrb[0].mxu0
    %v304 = vadd.f32 %v232, %v303
    %v305 = vpop.f32.mrb[0].mxu0
    %306 = vdwg.mxu0
    %vm307 = vcmask 31744
    %308 = vst.msk [vmem:[%s7] sm:$0xff] %vm307, %v304
    // Predicated region
    $region38: #{trpo_actor_forward.1} parent=1 // pred_check
      _
    $region39: #{trpo_actor_forward.1} parent=1 // pred_check_branch
      %310 = sbr.rel (0) target = $region41
    $region40: #{trpo_actor_forward.1} parent=1 // pred_region
      _
    $region41: #{trpo_actor_forward.1} parent=1 // pred_fallthru
      _
    // Predicated region
    $region42: #{trpo_actor_forward.1} parent=1 // pred_check
      _
    $region43: #{trpo_actor_forward.1} parent=1 // pred_check_branch
      %312 = sbr.rel (0) target = $region45
    $region44: #{trpo_actor_forward.1} parent=1 // pred_region
      _
    $region45: #{trpo_actor_forward.1} parent=1 // pred_fallthru
      _
    %313 = vsyncpa [#allocation3], 1
    %314 = vsyncpa [#allocation5], 1

</llo_original>
